<compile_context>
chip_gen: v7x
topology: tpu7x:2x2x1
jax: 0.10.0
libtpu: 0.0.40
codegen_flags: <defaults>
</compile_context>

<pallas_src>
import functools

import jax
import jax.numpy as jnp
import numpy as np
from jax.experimental import pallas as pl
from jax.experimental.pallas import tpu as pltpu


def _round_up(x: int, m: int) -> int:
    return ((x + m - 1) // m) * m


# ---------------------------------------------------------------------------
# Kernels
# ---------------------------------------------------------------------------
def _linear_kernel_single_k(x_ref, w_ref, b_ref, o_ref):
    # Whole reduction in one K tile: no accumulator scratch, no pl.when.
    o_ref[...] = (jnp.dot(x_ref[...], w_ref[...],
                          preferred_element_type=jnp.float32)
                  + b_ref[...]).astype(o_ref.dtype)


def _linear_kernel_multi_k(x_ref, w_ref, b_ref, o_ref, acc_ref):
    # x_ref: (tm, tk), w_ref: (tk, tn) already [D, O]-layout, b_ref: (1, tn)
    # o_ref: (tm, tn) resident across the k axis, acc_ref: (tm, tn) f32 scratch
    k = pl.program_id(2)

    @pl.when(k == 0)
    def _init():
        acc_ref[...] = jnp.zeros_like(acc_ref)

    acc_ref[...] += jnp.dot(x_ref[...], w_ref[...],
                            preferred_element_type=jnp.float32)

    @pl.when(k == pl.num_programs(2) - 1)
    def _finalize():
        o_ref[...] = (acc_ref[...] + b_ref[...]).astype(o_ref.dtype)


# ---------------------------------------------------------------------------
# Jitted forward (weight/bias are already pre-transposed & padded at init)
# ---------------------------------------------------------------------------
@functools.partial(
    jax.jit,
    static_argnames=("in_dim", "out_dim", "tk", "tm_max", "tn_max",
                     "compute_dtype", "weight_buffers"))
def _linear_forward(x, w_t, b_p, *, in_dim, out_dim, tk, tm_max, tn_max,
                    compute_dtype, weight_buffers):
    cd = jnp.dtype(compute_dtype)
    out_dtype = x.dtype
    lead_shape = x.shape[:-1]
    assert x.shape[-1] == in_dim, "input_dim mismatch"

    x2 = x.reshape(-1, in_dim).astype(cd)
    B = x2.shape[0]
    D_pad, O_pad = w_t.shape

    # Exact zero padding along the reduction axis only (required: garbage in a
    # partial K tile would corrupt valid outputs).  M/N partial blocks are
    # handled by Pallas masked stores, so no B/O padding copies.
    if D_pad != in_dim:
        x2 = jnp.pad(x2, ((0, 0), (0, D_pad - in_dim)))

    # ---- tile selection ---------------------------------------------------
    m_align = 16 if cd == jnp.bfloat16 else 8      # bf16 packs 16 rows / vreg
    tm = min(tm_max, _round_up(B, m_align))
    tn = min(tn_max, O_pad)
    grid_m = pl.cdiv(B, tm)
    # v7x megacore: guarantee >= 2 blocks on a "parallel" axis when the batch
    # axis collapses to a single block (no-op on single-TC v5e/v6e).
    if grid_m == 1 and (O_pad // tn) < 2 and O_pad >= 256:
        tn = _round_up(O_pad // 2, 128)
    grid_n = pl.cdiv(out_dim, tn)
    grid_k = D_pad // tk
    grid = (grid_m, grid_n, grid_k)

    # ---- block specs --------------------------------------------------------
    x_spec = pl.BlockSpec((tm, tk), lambda i, j, k: (i, k))
    if weight_buffers > 2:
        # Deeper pipelining on the weight stream for weight-DMA-bound cases.
        w_spec = pl.BlockSpec((tk, tn), lambda i, j, k: (k, j),
                              pipeline_mode=pl.Buffered(weight_buffers))
    else:
        w_spec = pl.BlockSpec((tk, tn), lambda i, j, k: (k, j))
    b_spec = pl.BlockSpec((1, tn), lambda i, j, k: (0, j))
    o_spec = pl.BlockSpec((tm, tn), lambda i, j, k: (i, j))

    if grid_k == 1:
        kernel = _linear_kernel_single_k
        scratch = []
    else:
        kernel = _linear_kernel_multi_k
        scratch = [pltpu.VMEM((tm, tn), jnp.float32)]

    # ---- VMEM budget & cost estimate ----------------------------------------
    in_sz = cd.itemsize
    out_sz = jnp.dtype(out_dtype).itemsize
    vmem_bytes = (2 * tm * tk * in_sz
                  + max(2, weight_buffers) * tk * tn * in_sz
                  + 2 * tn * 4
                  + 2 * tm * tn * out_sz
                  + (tm * tn * 4 if grid_k > 1 else 0))
    vmem_limit = min(48 * 1024 * 1024,
                     max(32 * 1024 * 1024, int(vmem_bytes * 3 // 2)))

    cost = pl.CostEstimate(
        flops=2 * B * D_pad * min(grid_n * tn, O_pad),
        transcendentals=0,
        bytes_accessed=(grid_n * B * D_pad * in_sz            # x re-read per j
                        + grid_m * D_pad * O_pad * in_sz      # w re-read per i
                        + grid_m * grid_n * grid_k * tn * 4   # bias
                        + B * out_dim * out_sz),              # output
    )

    out = pl.pallas_call(
        kernel,
        out_shape=jax.ShapeDtypeStruct((B, out_dim), out_dtype),
        grid_spec=pltpu.PrefetchScalarGridSpec(
            num_scalar_prefetch=0,
            grid=grid,
            in_specs=[x_spec, w_spec, b_spec],
            out_specs=o_spec,
            scratch_shapes=scratch,
        ),
        compiler_params=pltpu.CompilerParams(
            dimension_semantics=("parallel", "parallel", "arbitrary"),
            vmem_limit_bytes=vmem_limit,
        ),
        cost_estimate=cost,
    )(x2, w_t, b_p)

    return out.reshape(lead_shape + (out_dim,))


# ---------------------------------------------------------------------------
# Module wrapper (parameter prep hoisted to __init__)
# ---------------------------------------------------------------------------
class LinearClassifier:
    """JAX/Pallas port of iterative_machine_teaching.networks.LinearClassifier.

    forward(x) == x @ weight.T + bias  (torch.nn.Linear semantics).
    The weight is transposed, cast and zero-padded to a lane-dense
    [D_pad, O_pad] layout exactly once at construction.
    """

    def __init__(self, weight, bias, *, compute_dtype=None,
                 tm_max=512, tn_max=1024, tk_max=512, weight_buffers=2):
        weight = jnp.asarray(weight)
        bias = jnp.asarray(bias)
        assert weight.ndim == 2 and bias.shape == (weight.shape[0],)
        assert tm_max % 16 == 0 and tn_max % 128 == 0 and tk_max % 128 == 0

        self.out_dim, self.in_dim = weight.shape
        self.weight = weight                      # [O, D], torch convention
        self.bias = bias                          # [O]
        cd = jnp.dtype(compute_dtype) if compute_dtype is not None else weight.dtype
        self._compute_dtype = str(cd)

        # Reduction-axis tiling decided once (D is a model constant).
        if self.in_dim <= tk_max:
            tk, d_pad = self.in_dim, self.in_dim       # single K tile, no pad
        else:
            tk = tk_max
            d_pad = _round_up(self.in_dim, tk)
        o_pad = _round_up(self.out_dim, 128)           # lane-dense weight/bias

        # One-time layout plumbing (hoisted out of the forward pass).
        self._w_t = (jnp.zeros((d_pad, o_pad), cd)
                     .at[:self.in_dim, :self.out_dim]
                     .set(weight.T.astype(cd)))
        self._b_p = (jnp.zeros((1, o_pad), jnp.float32)
                     .at[0, :self.out_dim]
                     .set(bias.astype(jnp.float32)))

        self._tk = tk
        self._tm_max = tm_max
        self._tn_max = tn_max
        self._weight_buffers = weight_buffers

    def __call__(self, x):
        return _linear_forward(
            x, self._w_t, self._b_p,
            in_dim=self.in_dim, out_dim=self.out_dim, tk=self._tk,
            tm_max=self._tm_max, tn_max=self._tn_max,
            compute_dtype=self._compute_dtype,
            weight_buffers=self._weight_buffers)

    # Parity with the abstract torch `Classifier.linear` property (no compute).
    @property
    def linear(self):
        return (self.weight, self.bias)


if __name__ == "__main__":
    key = jax.random.PRNGKey(0)
    kx, kw, kb, kx2, kw2, kb2 = jax.random.split(key, 6)

    # ---- small shapes matching LinearClassifier(input_dim, output_dim) -----
    batch, input_dim, output_dim = 8, 32, 16
    bound = 1.0 / (input_dim ** 0.5)
    weight = jax.random.uniform(kw, (output_dim, input_dim), jnp.float32,
                                minval=-bound, maxval=bound)
    bias = jax.random.uniform(kb, (output_dim,), jnp.float32,
                              minval=-bound, maxval=bound)
    x = jax.random.normal(kx, (batch, input_dim), jnp.float32)

    ref = (np.asarray(x, np.float64) @ np.asarray(weight, np.float64).T
           + np.asarray(bias, np.float64))

    # f32 path, single-K-tile specialized kernel.
    clf = LinearClassifier(weight, bias)
    out = jax.block_until_ready(clf(x))
    assert out.shape == (batch, output_dim)
    assert np.allclose(np.asarray(out, np.float64), ref, atol=5e-4, rtol=1e-4), \
        "f32 single-k mismatch vs reference"

    # bf16 MXU-input path (f32 accumulation) on the same shapes.
    clf_bf16 = LinearClassifier(weight, bias, compute_dtype=jnp.bfloat16)
    out_bf16 = jax.block_until_ready(clf_bf16(x))
    assert out_bf16.shape == (batch, output_dim)
    assert np.allclose(np.asarray(out_bf16, np.float64), ref, atol=5e-2, rtol=5e-2), \
        "bf16 mismatch vs reference"

    # Multi-K-tile (accumulator) path: D larger than the K tile cap.
    b2, d2, o2 = 8, 640, 48
    bound2 = 1.0 / (d2 ** 0.5)
    w2 = jax.random.uniform(kw2, (o2, d2), jnp.float32,
                            minval=-bound2, maxval=bound2)
    bi2 = jax.random.uniform(kb2, (o2,), jnp.float32,
                             minval=-bound2, maxval=bound2)
    x_big = jax.random.normal(kx2, (b2, d2), jnp.float32)
    ref2 = (np.asarray(x_big, np.float64) @ np.asarray(w2, np.float64).T
            + np.asarray(bi2, np.float64))

    clf2 = LinearClassifier(w2, bi2, tk_max=256)   # -> D_pad=768, 3 K steps
    out2 = jax.block_until_ready(clf2(x_big))
    assert out2.shape == (b2, o2)
    assert np.allclose(np.asarray(out2, np.float64), ref2, atol=3e-3, rtol=3e-3), \
        "f32 multi-k mismatch vs reference"

    print("KERNEL_OK")
</pallas_src>

<mosaic_0001>
module attributes {stable_mosaic.version = 11 : i64} {
  func.func @_linear_kernel_single_k(%arg0: i32, %arg1: i32, %arg2: i32, %arg3: memref<8x32xf32, #tpu.memory_space<vmem>>, %arg4: memref<32x128xf32, #tpu.memory_space<vmem>>, %arg5: memref<1x128xf32, #tpu.memory_space<vmem>>, %arg6: memref<8x128xf32, #tpu.memory_space<vmem>>) attributes {dimension_semantics = [#tpu.dimension_semantics<parallel>, #tpu.dimension_semantics<parallel>, #tpu.dimension_semantics<arbitrary>], iteration_bounds = array<i64: 1, 1, 1>, scalar_prefetch = 0 : i64, scratch_operands = 0 : i64, tpu.core_type = #tpu.core_type<tc>, window_params = [{transform_indices = @transform_0, window_bounds = array<i64: 8, 32>}, {transform_indices = @transform_1, window_bounds = array<i64: 32, 128>}, {transform_indices = @transform_2, window_bounds = array<i64: 1, 128>}, {transform_indices = @transform_3, window_bounds = array<i64: 8, 128>}]} {
    %c0 = arith.constant 0 : index
    %c0_0 = arith.constant 0 : index
    %0 = vector.load %arg3[%c0, %c0_0] : memref<8x32xf32, #tpu.memory_space<vmem>>, vector<8x32xf32>
    %c0_1 = arith.constant 0 : index
    %c0_2 = arith.constant 0 : index
    %1 = vector.load %arg4[%c0_1, %c0_2] : memref<32x128xf32, #tpu.memory_space<vmem>>, vector<32x128xf32>
    %cst = arith.constant dense<0.000000e+00> : vector<8x128xf32>
    %2 = tpu.matmul %0, %1, %cst {dimension_numbers = #tpu.dot_dimension_numbers<[1], [0], [0], [1], [0, 0, 1, 1], [], []>} : vector<8x32xf32>, vector<32x128xf32>, vector<8x128xf32> -> vector<8x128xf32>
    %c0_3 = arith.constant 0 : index
    %c0_4 = arith.constant 0 : index
    %3 = vector.load %arg5[%c0_3, %c0_4] : memref<1x128xf32, #tpu.memory_space<vmem>>, vector<1x128xf32>
    %4 = vector.broadcast %3 : vector<1x128xf32> to vector<8x128xf32>
    %5 = arith.addf %2, %4 : vector<8x128xf32>
    %c0_5 = arith.constant 0 : index
    %c0_6 = arith.constant 0 : index
    %6 = vector.load %arg6[%c0_5, %c0_6] : memref<8x128xf32, #tpu.memory_space<vmem>>, vector<8x128xf32>
    tpu.vector_store %arg6[%c0_5, %c0_6], %5 {strides = array<i32>} : memref<8x128xf32, #tpu.memory_space<vmem>>, vector<8x128xf32>,
    return
  }
  func.func @transform_0(%arg0: i32, %arg1: i32, %arg2: i32) -> (i32, i32) {
    %c0_i32 = arith.constant 0 : i32
    return %arg0, %arg2 : i32, i32
  }
  func.func @transform_1(%arg0: i32, %arg1: i32, %arg2: i32) -> (i32, i32) {
    %c0_i32 = arith.constant 0 : i32
    return %arg2, %arg1 : i32, i32
  }
  func.func @transform_2(%arg0: i32, %arg1: i32, %arg2: i32) -> (i32, i32) {
    %c0_i32 = arith.constant 0 : i32
    %c0_i32_0 = arith.constant 0 : i32
    return %c0_i32, %arg1 : i32, i32
  }
  func.func @transform_3(%arg0: i32, %arg1: i32, %arg2: i32) -> (i32, i32) {
    %c0_i32 = arith.constant 0 : i32
    return %arg0, %arg1 : i32, i32
  }
}

</mosaic_0001>

<llo_original>
// kernel: _linear_forward.1
$region0: #{_linear_forward.1}
  #allocation0 [shape = 'u32[]', space=smem, size = 0x4, offset = 0x4, fixed_abs, tag = 'smem constant byte address 0x4 - core index']
  #allocation1 [shape = 'u32[144,128]{1,0:T(1,128)}', space=vmem, size = 0x12000, scoped, tag = 'internal scratch']
  %s0 = inlined_call_operand.hbm [shape: f32[8,32], index: 0, kind: input, shape index: {}]
  %s1 = inlined_call_operand.hbm [shape: f32[32,128], index: 1, kind: input, shape index: {}]
  %s2 = inlined_call_operand.vmem [shape: f32[1,128], index: 2, kind: input, shape index: {}]
  %s3 = inlined_call_operand.hbm [shape: f32[8,16], index: 3, kind: output, shape index: {}]
  %s4 = sld [smem:[#allocation0]]
  $region30: #{_linear_forward.1} parent=0
    _
  %s6 = ssub.s32 1, %s4
  %s7 = scalar_select 0, %s6, %s4
  $region1: #{_linear_forward.1} parent=0
    #allocation2 [shape = 'u8[4096]{0}', space=vmem, size = 0x1000, scoped, tag = 'input window, operand 0, single buffered']
    #allocation3 [shape = 's32[1]{0}', space=sflag, size = 0x4, scoped, tag = 'scoped memory for _linear_forward.1']
    #allocation4 [shape = 's32[1]{0}', space=sflag, size = 0x4, scoped, tag = 'scoped memory for _linear_forward.1']
    #allocation5 [shape = 'u8[16384]{0}', space=vmem, size = 0x4000, scoped, tag = 'input window, operand 1, single buffered']
    #allocation6 [shape = 's32[1]{0}', space=sflag, size = 0x4, scoped, tag = 'scoped memory for _linear_forward.1']
    #allocation7 [shape = 'u8[4096]{0}', space=vmem, size = 0x1000, scoped, tag = 'output window, operand 0, single buffered']
    %8 = vsyncpa [#allocation3], 0
    %9 = vsyncpa [#allocation6], 0
    %10 = vsyncpa [#allocation4], 0
    // Predicated region
    $region2: #{_linear_forward.1} parent=1 // pred_check
      _
    $region3: #{_linear_forward.1} parent=1 // pred_check_branch
      %12 = sbr.rel (0) target = $region5
    $region4: #{_linear_forward.1} parent=1 // pred_region
      %s14 = ssub.s32 128, 128
      %15 = vsyncadd [#allocation3], %s14
      %s17 = sshll.u32 [#allocation2], 4
      %s18 = int_to_ptr.vmem [resolvable:$true] %s17
      %20 = dma.hbm_to_vmem [thread:$0]  %s0, 128, %s18, [#allocation3]
    $region5: #{_linear_forward.1} parent=1 // pred_fallthru
      _
    // Predicated region
    $region6: #{_linear_forward.1} parent=1 // pred_check
      _
    $region7: #{_linear_forward.1} parent=1 // pred_check_branch
      %22 = sbr.rel (0) target = $region9
    $region8: #{_linear_forward.1} parent=1 // pred_region
      %s24 = ssub.s32 512, 512
      %25 = vsyncadd [#allocation6], %s24
      %s26 = sshll.u32 [#allocation5], 4
      %s27 = int_to_ptr.vmem [resolvable:$true] %s26
      %32 = dma.hbm_to_vmem [thread:$0]  %s1, 512, %s27, [#allocation6], 128, 128, 8
    $region9: #{_linear_forward.1} parent=1 // pred_fallthru
      _
    // Predicated region
    $region10: #{_linear_forward.1} parent=1 // pred_check
      _
    $region11: #{_linear_forward.1} parent=1 // pred_check_branch
      %34 = sbr.rel (0) target = $region13
    $region12: #{_linear_forward.1} parent=1 // pred_region
      _
    $region13: #{_linear_forward.1} parent=1 // pred_fallthru
      _
    // Predicated region
    $region14: #{_linear_forward.1} parent=1 // pred_check
      _
    $region15: #{_linear_forward.1} parent=1 // pred_check_branch
      %36 = sbr.rel (0) target = $region17
    $region16: #{_linear_forward.1} parent=1 // pred_region
      %37 = dma.done [#allocation3], 128
    $region17: #{_linear_forward.1} parent=1 // pred_fallthru
      _
    // Predicated region
    $region18: #{_linear_forward.1} parent=1 // pred_check
      _
    $region19: #{_linear_forward.1} parent=1 // pred_check_branch
      %39 = sbr.rel (0) target = $region21
    $region20: #{_linear_forward.1} parent=1 // pred_region
      %40 = dma.done [#allocation6], 512
    $region21: #{_linear_forward.1} parent=1 // pred_fallthru
      _
    %v41 = vld [vmem:[#allocation2] sm:$0xff]
    %v42 = vld [vmem:[#allocation5] sm:$0xff]
    %v43 = vld [vmem:[#allocation5 + $0x8] sm:$0xff]
    %v44 = vld [vmem:[#allocation5 + $0x10] sm:$0xff]
    %v45 = vld [vmem:[#allocation5 + $0x18] sm:$0xff]
    %v46 = vld [vmem:[%s2] sm:$0x1]
    %v48 = vlaneseq
    %v49 = vshrl.u32 %v48, 7
    %v50 = vsub.s32 0, %v49
    %v51 = vrot.slane %v46, %v50
    %vm53 = vcmask 261120
    %v55 = vsel %vm53, %v41, 0
    %57 = vmatprep.subr.mxu0 0.0
    %58 = vmatpush1.msra.mxu0 %v42
    %59 = vmatprep.subr.mxu0 0.0
    %60 = vmatpush1.msra.mxu0 %v43
    %61 = vmatprep.subr.mxu0 0.0
    %62 = vmatpush1.msra.mxu0 %v44
    %63 = vmatprep.subr.mxu0 0.0
    %64 = vmatpush1.msra.mxu0 %v45
    %65 = vmatprep.subr.mxu0 0.0
    %66 = vmatpush1.msra.mxu0 0.0
    %67 = vmatprep.subr.mxu0 0.0
    %68 = vmatpush1.msra.mxu0 0.0
    %69 = vmatprep.subr.mxu0 0.0
    %70 = vmatpush1.msra.mxu0 0.0
    %71 = vmatprep.subr.mxu0 0.0
    %72 = vmatpush1.msra.mxu0 0.0
    %73 = vmatprep.subr.mxu0 0.0
    %74 = vmatpush1.msra.mxu0 0.0
    %75 = vmatprep.subr.mxu0 0.0
    %76 = vmatpush1.msra.mxu0 0.0
    %77 = vmatprep.subr.mxu0 0.0
    %78 = vmatpush1.msra.mxu0 0.0
    %79 = vmatprep.subr.mxu0 0.0
    %80 = vmatpush1.msra.mxu0 0.0
    %81 = vmatprep.subr.mxu0 0.0
    %82 = vmatpush1.msra.mxu0 0.0
    %83 = vmatprep.subr.mxu0 0.0
    %84 = vmatpush1.msra.mxu0 0.0
    %85 = vmatprep.subr.mxu0 0.0
    %86 = vmatpush1.msra.mxu0 0.0
    %87 = vmatprep.subr.mxu0 0.0
    %88 = vmatpush1.msra.mxu0 0.0
    %89 = vmatprep.subr.mxu0 0.0
    %90 = vmatpush1.msra.mxu0 0.0
    %91 = vmatprep.subr.mxu0 0.0
    %92 = vmatpush1.msra.mxu0 0.0
    %93 = vmatprep.subr.mxu0 0.0
    %94 = vmatpush1.msra.mxu0 0.0
    %95 = vmatprep.subr.mxu0 0.0
    %96 = vmatpush1.msra.mxu0 0.0
    %97 = vmatprep.subr.mxu0 0.0
    %98 = vmatpush1.msra.mxu0 0.0
    %99 = vmatprep.subr.mxu0 0.0
    %100 = vmatpush1.msra.mxu0 0.0
    %101 = vmatprep.subr.mxu0 0.0
    %102 = vmatpush1.msra.mxu0 0.0
    %103 = vmatprep.subr.mxu0 0.0
    %104 = vmatpush1.msra.mxu0 0.0
    %105 = vmatprep.subr.mxu0 0.0
    %106 = vmatpush1.msra.mxu0 0.0
    %107 = vmatprep.subr.mxu0 0.0
    %108 = vmatpush1.msra.mxu0 0.0
    %109 = vmatprep.subr.mxu0 0.0
    %110 = vmatpush1.msra.mxu0 0.0
    %111 = vmatprep.subr.mxu0 0.0
    %112 = vmatpush1.msra.mxu0 0.0
    %113 = vmatprep.subr.mxu0 0.0
    %114 = vmatpush1.msra.mxu0 0.0
    %115 = vmatprep.subr.mxu0 0.0
    %116 = vmatpush1.msra.mxu0 0.0
    %117 = vmatprep.subr.mxu0 0.0
    %118 = vmatpush1.msra.mxu0 0.0
    %119 = vmatprep.subr.mxu0 0.0
    %120 = vmatpush1.msra.mxu0 0.0
    %121 = vmatprep.mubr.f32.mxu0 0.0
    %122 = vmatmul.mubr.f32.gmra.mrb[0].mxu0 %v55
    %v123 = vpop.f32.mrb[0].mxu0
    %v124 = vadd.f32 %v51, %v123
    %v125 = vpop.f32.mrb[0].mxu0
    %126 = vdwg.mxu0
    %127 = vst [vmem:[#allocation7] sm:$0xff] %v124
    // Predicated region
    $region22: #{_linear_forward.1} parent=1 // pred_check
      _
    $region23: #{_linear_forward.1} parent=1 // pred_check_branch
      %129 = sbr.rel (0) target = $region25
    $region24: #{_linear_forward.1} parent=1 // pred_region
      %s131 = ssub.s32 128, 128
      %132 = vsyncadd [#allocation4], %s131
      %s134 = sshll.u32 [#allocation7], 4
      %s135 = int_to_ptr.vmem [resolvable:$true] %s134
      %137 = dma.vmem_to_hbm [thread:$0]  %s135, 128, %s3, [#allocation4]
    $region25: #{_linear_forward.1} parent=1 // pred_fallthru
      _
    // Predicated region
    $region26: #{_linear_forward.1} parent=1 // pred_check
      _
    $region27: #{_linear_forward.1} parent=1 // pred_check_branch
      %139 = sbr.rel (0) target = $region29
    $region28: #{_linear_forward.1} parent=1 // pred_region
      %140 = dma.done [#allocation4], 128
    $region29: #{_linear_forward.1} parent=1 // pred_fallthru
      _
    %141 = vsyncpa [#allocation3], 1
    %142 = vsyncpa [#allocation6], 1
    %143 = vsyncpa [#allocation4], 1

</llo_original>
